<compile_context>
chip_gen: v7x
topology: tpu7x:2x2x1
jax: 0.10.0
libtpu: 0.0.40
codegen_flags: <defaults>
</compile_context>

<pallas_src>
import functools

import jax
import jax.numpy as jnp
import numpy as np
from jax.experimental import pallas as pl
from jax.experimental.pallas import tpu as pltpu


def homo_kernel(xT_ref,
                w1_ref, b1_ref,
                w2_ref, b2_ref,
                w3_ref, b3_ref,
                w4_ref, b4_ref,
                w5t_ref, b5_ref,
                o_ref):
    # ---- Layer 1: K = D_in (tiny) -> VPU broadcast FMAs, not an MXU push ----
    w1 = w1_ref[...]                              # (H, D_in), scale pre-folded
    d_in = w1.shape[1]
    z1 = w1[:, 0:1] * xT_ref[0:1, :]              # (H, tile_n)
    for k in range(1, d_in):
        z1 = z1 + w1[:, k:k + 1] * xT_ref[k:k + 1, :]
    y1 = jnp.tanh(z1 + b1_ref[...])               # bias (H, 1) broadcasts over lanes

    # ---- Layers 2-4: (H, H) @ (H, tile_n) on the MXU ----
    def mid(v, w_ref, b_ref):
        z = jnp.dot(w_ref[...], v, preferred_element_type=jnp.float32)
        return jnp.tanh(z + b_ref[...])

    y2 = mid(y1, w2_ref, b2_ref)
    y3 = mid(y2, w3_ref, b3_ref) + y1
    y4 = mid(y3, w4_ref, b4_ref) + y2

    # ---- Layer 5: D_out tiny -> sublane reduction (VPU + XLU), no MXU push ----
    w5t = w5t_ref[...]                            # (H, D_out)
    b5 = b5_ref[...]                              # (D_out, 1)
    d_out = w5t.shape[1]
    rows = [jnp.sum(w5t[:, o:o + 1] * y4, axis=0, keepdims=True) + b5[o:o + 1, 0:1]
            for o in range(d_out)]
    y = rows[0] if d_out == 1 else jnp.concatenate(rows, axis=0)
    o_ref[...] = y.astype(o_ref.dtype)            # (D_out, tile_n): lane-dense store


@functools.partial(jax.jit, static_argnames=("tile_n",))
def homo_forward(x, params, scale, *, tile_n=4096):
    """x: (N, D_in) f32.  params: PyTorch-layout (out, in) weights, (out, 1) biases.
    scale: (1,) f32 runtime scalar (= n * a1).  Returns (N, D_out) f32."""
    n, d_in = x.shape
    h = params["w1"].shape[0]
    d_out = params["w5"].shape[0]

    # Fold the runtime scale into layers 1-4: tanh(s*(Wx+b)) == tanh((sW)x+(sb)).
    s = scale[0]
    w1, b1 = s * params["w1"], s * params["b1"]
    w2, b2 = s * params["w2"], s * params["b2"]
    w3, b3 = s * params["w3"], s * params["b3"]
    w4, b4 = s * params["w4"], s * params["b4"]
    w5t, b5 = params["w5"].T, params["b5"]        # (H, D_out), (D_out, 1)

    # Lane-dense layout: batch on lanes, features on sublanes.
    xT = x.T                                      # (D_in, N)

    # Static tile choice: big tiles amortize per-step overhead; keep >=2 grid
    # steps when there is enough work so v7x's two TensorCores both run.
    n128 = ((n + 127) // 128) * 128
    eff_tile = max(128, (min(int(tile_n), n128) // 128) * 128)
    if n128 // eff_tile < 2 and n128 >= 256:
        eff_tile = max(128, ((n128 // 2) // 128) * 128)
    n_pad = ((n128 + eff_tile - 1) // eff_tile) * eff_tile
    if n_pad != n:
        xT = jnp.pad(xT, ((0, 0), (0, n_pad - n)))

    grid = (n_pad // eff_tile,)

    # Weights/biases: full (tiny) arrays, constant index_map -> resident in VMEM,
    # not re-DMAed between grid steps.
    def const_spec(shape):
        return pl.BlockSpec(shape, lambda i, _nd=len(shape): (0,) * _nd)

    in_specs = [
        pl.BlockSpec((d_in, eff_tile), lambda i: (0, i)),   # x^T tile
        const_spec((h, d_in)),  const_spec((h, 1)),         # L1
        const_spec((h, h)),     const_spec((h, 1)),         # L2
        const_spec((h, h)),     const_spec((h, 1)),         # L3
        const_spec((h, h)),     const_spec((h, 1)),         # L4
        const_spec((h, d_out)), const_spec((d_out, 1)),     # L5 (weight stored (H, D_out))
    ]
    out_spec = pl.BlockSpec((d_out, eff_tile), lambda i: (0, i))

    yT = pl.pallas_call(
        homo_kernel,
        out_shape=jax.ShapeDtypeStruct((d_out, n_pad), jnp.float32),
        grid=grid,
        in_specs=in_specs,
        out_specs=out_spec,
        compiler_params=pltpu.CompilerParams(
            dimension_semantics=("parallel",)),
    )(xT, w1, b1, w2, b2, w3, b3, w4, b4, w5t, b5)

    return yT[:, :n].T                            # back to (N, D_out)


def init_params(key, d_in, h, d_out):
    """Deterministic init matching the torch.nn.init.normal_ calls in __init__.
    Weights kept in PyTorch (out, in) layout; biases as (out, 1) columns."""
    ks = jax.random.split(key, 10)

    def nrm(k, shape, std):
        return (std * jax.random.normal(k, shape)).astype(jnp.float32)

    return {
        "w1": nrm(ks[0], (h, d_in), np.sqrt(2.0 / (d_in + h))),
        "b1": nrm(ks[1], (h, 1), 1.0),
        "w2": nrm(ks[2], (h, h), np.sqrt(2.0 / (h + h))),
        "b2": nrm(ks[3], (h, 1), 1.0),
        "w3": nrm(ks[4], (h, h), np.sqrt(2.0 / (h + h))),
        "b3": nrm(ks[5], (h, 1), 1.0),
        "w4": nrm(ks[6], (h, h), np.sqrt(2.0 / (h + h))),
        "b4": nrm(ks[7], (h, 1), 1.0),
        "w5": nrm(ks[8], (d_out, h), np.sqrt(2.0 / (h + d_out))),
        "b5": nrm(ks[9], (d_out, 1), 1.0),
    }


def homo_reference(x, params, scale):
    """Pure-JAX reference for correctness checking (PyTorch (out, in) weights)."""
    s = scale[0]

    def lin(v, w, b):
        return v @ w.T + b[:, 0]

    y1 = jnp.tanh(s * lin(x, params["w1"], params["b1"]))
    y2 = jnp.tanh(s * lin(y1, params["w2"], params["b2"]))
    y3 = jnp.tanh(s * lin(y2, params["w3"], params["b3"])) + y1
    y4 = jnp.tanh(s * lin(y3, params["w4"], params["b4"])) + y2
    return lin(y4, params["w5"], params["b5"])


if __name__ == "__main__":
    # Module is used as homo(D_in=2, H=32, D_out=1) on (x, y) collocation points.
    D_in, H, D_out = 2, 32, 1
    N = 500   # deliberately not a multiple of 128 to exercise lane padding

    key = jax.random.PRNGKey(0)
    kx, kp = jax.random.split(key)

    x = jax.random.uniform(kx, (N, D_in), dtype=jnp.float32, minval=-1.0, maxval=1.0)
    params = init_params(kp, D_in, H, D_out)

    a1 = jnp.float32(0.1)
    n_coef = jnp.float32(1.0) / a1          # self.n = 1 / a1.data
    scale = jnp.reshape(n_coef * a1, (1,))  # s = n * a1

    out = jax.block_until_ready(homo_forward(x, params, scale))

    # High-precision reference (avoids XLA's default bf16-pass f32 matmuls so the
    # comparison reflects kernel correctness, not reference sloppiness).
    with jax.default_matmul_precision("highest"):
        ref = jax.block_until_ready(homo_reference(x, params, scale))

    assert out.shape == (N, D_out)
    assert bool(jnp.allclose(out, ref, atol=2e-3, rtol=2e-3)), "mismatch vs reference"

    print("KERNEL_OK")
</pallas_src>

<mosaic_0001>
module attributes {stable_mosaic.version = 11 : i64} {
  func.func @homo_kernel(%arg0: i32, %arg1: memref<2x256xf32, #tpu.memory_space<vmem>>, %arg2: memref<32x2xf32, #tpu.memory_space<vmem>>, %arg3: memref<32x1xf32, #tpu.memory_space<vmem>>, %arg4: memref<32x32xf32, #tpu.memory_space<vmem>>, %arg5: memref<32x1xf32, #tpu.memory_space<vmem>>, %arg6: memref<32x32xf32, #tpu.memory_space<vmem>>, %arg7: memref<32x1xf32, #tpu.memory_space<vmem>>, %arg8: memref<32x32xf32, #tpu.memory_space<vmem>>, %arg9: memref<32x1xf32, #tpu.memory_space<vmem>>, %arg10: memref<32x1xf32, #tpu.memory_space<vmem>>, %arg11: memref<1x1xf32, #tpu.memory_space<vmem>>, %arg12: memref<1x256xf32, #tpu.memory_space<vmem>>) attributes {dimension_semantics = [#tpu.dimension_semantics<parallel>], iteration_bounds = array<i64: 2>, scalar_prefetch = 0 : i64, scratch_operands = 0 : i64, tpu.core_type = #tpu.core_type<tc>, window_params = [{transform_indices = @transform_0, window_bounds = array<i64: 2, 256>}, {pipeline_mode = #tpu.pipeline_mode<synchronous>, transform_indices = @transform_1, window_bounds = array<i64: 32, 2>}, {pipeline_mode = #tpu.pipeline_mode<synchronous>, transform_indices = @transform_2, window_bounds = array<i64: 32, 1>}, {pipeline_mode = #tpu.pipeline_mode<synchronous>, transform_indices = @transform_3, window_bounds = array<i64: 32, 32>}, {pipeline_mode = #tpu.pipeline_mode<synchronous>, transform_indices = @transform_4, window_bounds = array<i64: 32, 1>}, {pipeline_mode = #tpu.pipeline_mode<synchronous>, transform_indices = @transform_5, window_bounds = array<i64: 32, 32>}, {pipeline_mode = #tpu.pipeline_mode<synchronous>, transform_indices = @transform_6, window_bounds = array<i64: 32, 1>}, {pipeline_mode = #tpu.pipeline_mode<synchronous>, transform_indices = @transform_7, window_bounds = array<i64: 32, 32>}, {pipeline_mode = #tpu.pipeline_mode<synchronous>, transform_indices = @transform_8, window_bounds = array<i64: 32, 1>}, {pipeline_mode = #tpu.pipeline_mode<synchronous>, transform_indices = @transform_9, window_bounds = array<i64: 32, 1>}, {pipeline_mode = #tpu.pipeline_mode<synchronous>, transform_indices = @transform_10, window_bounds = array<i64: 1, 1>}, {transform_indices = @transform_11, window_bounds = array<i64: 1, 256>}]} {
    %c0 = arith.constant 0 : index
    %c0_0 = arith.constant 0 : index
    %0 = vector.load %arg2[%c0, %c0_0] : memref<32x2xf32, #tpu.memory_space<vmem>>, vector<32x2xf32>
    %1 = vector.extract_strided_slice %0 {offsets = [0, 0], sizes = [32, 1], strides = [1, 1]} : vector<32x2xf32> to vector<32x1xf32>
    %c0_1 = arith.constant 0 : index
    %c0_2 = arith.constant 0 : index
    %2 = vector.load %arg1[%c0_1, %c0_2] : memref<2x256xf32, #tpu.memory_space<vmem>>, vector<1x256xf32>
    %3 = vector.broadcast %1 : vector<32x1xf32> to vector<32x256xf32>
    %4 = vector.broadcast %2 : vector<1x256xf32> to vector<32x256xf32>
    %5 = arith.mulf %3, %4 : vector<32x256xf32>
    %6 = vector.extract_strided_slice %0 {offsets = [0, 1], sizes = [32, 1], strides = [1, 1]} : vector<32x2xf32> to vector<32x1xf32>
    %c1 = arith.constant 1 : index
    %c0_3 = arith.constant 0 : index
    %7 = vector.load %arg1[%c1, %c0_3] : memref<2x256xf32, #tpu.memory_space<vmem>>, vector<1x256xf32>
    %8 = vector.broadcast %6 : vector<32x1xf32> to vector<32x256xf32>
    %9 = vector.broadcast %7 : vector<1x256xf32> to vector<32x256xf32>
    %10 = arith.mulf %8, %9 : vector<32x256xf32>
    %11 = arith.addf %5, %10 : vector<32x256xf32>
    %c0_4 = arith.constant 0 : index
    %c0_5 = arith.constant 0 : index
    %12 = vector.load %arg3[%c0_4, %c0_5] : memref<32x1xf32, #tpu.memory_space<vmem>>, vector<32x1xf32>
    %13 = vector.broadcast %12 : vector<32x1xf32> to vector<32x256xf32>
    %14 = arith.addf %11, %13 : vector<32x256xf32>
    %15 = math.tanh %14 : vector<32x256xf32>
    %c0_6 = arith.constant 0 : index
    %c0_7 = arith.constant 0 : index
    %16 = vector.load %arg4[%c0_6, %c0_7] : memref<32x32xf32, #tpu.memory_space<vmem>>, vector<32x32xf32>
    %cst = arith.constant dense<0.000000e+00> : vector<32x256xf32>
    %17 = tpu.matmul %16, %15, %cst {dimension_numbers = #tpu.dot_dimension_numbers<[1], [0], [0], [1], [0, 0, 1, 1], [], []>} : vector<32x32xf32>, vector<32x256xf32>, vector<32x256xf32> -> vector<32x256xf32>
    %c0_8 = arith.constant 0 : index
    %c0_9 = arith.constant 0 : index
    %18 = vector.load %arg5[%c0_8, %c0_9] : memref<32x1xf32, #tpu.memory_space<vmem>>, vector<32x1xf32>
    %19 = vector.broadcast %18 : vector<32x1xf32> to vector<32x256xf32>
    %20 = arith.addf %17, %19 : vector<32x256xf32>
    %21 = math.tanh %20 : vector<32x256xf32>
    %c0_10 = arith.constant 0 : index
    %c0_11 = arith.constant 0 : index
    %22 = vector.load %arg6[%c0_10, %c0_11] : memref<32x32xf32, #tpu.memory_space<vmem>>, vector<32x32xf32>
    %cst_12 = arith.constant dense<0.000000e+00> : vector<32x256xf32>
    %23 = tpu.matmul %22, %21, %cst_12 {dimension_numbers = #tpu.dot_dimension_numbers<[1], [0], [0], [1], [0, 0, 1, 1], [], []>} : vector<32x32xf32>, vector<32x256xf32>, vector<32x256xf32> -> vector<32x256xf32>
    %c0_13 = arith.constant 0 : index
    %c0_14 = arith.constant 0 : index
    %24 = vector.load %arg7[%c0_13, %c0_14] : memref<32x1xf32, #tpu.memory_space<vmem>>, vector<32x1xf32>
    %25 = vector.broadcast %24 : vector<32x1xf32> to vector<32x256xf32>
    %26 = arith.addf %23, %25 : vector<32x256xf32>
    %27 = math.tanh %26 : vector<32x256xf32>
    %28 = arith.addf %27, %15 : vector<32x256xf32>
    %c0_15 = arith.constant 0 : index
    %c0_16 = arith.constant 0 : index
    %29 = vector.load %arg8[%c0_15, %c0_16] : memref<32x32xf32, #tpu.memory_space<vmem>>, vector<32x32xf32>
    %cst_17 = arith.constant dense<0.000000e+00> : vector<32x256xf32>
    %30 = tpu.matmul %29, %28, %cst_17 {dimension_numbers = #tpu.dot_dimension_numbers<[1], [0], [0], [1], [0, 0, 1, 1], [], []>} : vector<32x32xf32>, vector<32x256xf32>, vector<32x256xf32> -> vector<32x256xf32>
    %c0_18 = arith.constant 0 : index
    %c0_19 = arith.constant 0 : index
    %31 = vector.load %arg9[%c0_18, %c0_19] : memref<32x1xf32, #tpu.memory_space<vmem>>, vector<32x1xf32>
    %32 = vector.broadcast %31 : vector<32x1xf32> to vector<32x256xf32>
    %33 = arith.addf %30, %32 : vector<32x256xf32>
    %34 = math.tanh %33 : vector<32x256xf32>
    %35 = arith.addf %34, %21 : vector<32x256xf32>
    %c0_20 = arith.constant 0 : index
    %c0_21 = arith.constant 0 : index
    %36 = vector.load %arg10[%c0_20, %c0_21] : memref<32x1xf32, #tpu.memory_space<vmem>>, vector<32x1xf32>
    %c0_22 = arith.constant 0 : index
    %c0_23 = arith.constant 0 : index
    %37 = vector.load %arg11[%c0_22, %c0_23] : memref<1x1xf32, #tpu.memory_space<vmem>>, vector<1x1xf32>
    %38 = vector.broadcast %36 : vector<32x1xf32> to vector<32x256xf32>
    %39 = arith.mulf %38, %35 : vector<32x256xf32>
    %cst_24 = arith.constant dense<0.000000e+00> : vector<256xf32>
    %40 = vector.multi_reduction <add>, %39, %cst_24 [0] : vector<32x256xf32> to vector<256xf32>
    %41 = vector.shape_cast %40 : vector<256xf32> to vector<1x256xf32>
    %42 = vector.broadcast %37 : vector<1x1xf32> to vector<1x256xf32>
    %43 = arith.addf %41, %42 : vector<1x256xf32>
    %c0_25 = arith.constant 0 : index
    %c0_26 = arith.constant 0 : index
    %44 = vector.load %arg12[%c0_25, %c0_26] : memref<1x256xf32, #tpu.memory_space<vmem>>, vector<1x256xf32>
    tpu.vector_store %arg12[%c0_25, %c0_26], %43 {strides = array<i32>} : memref<1x256xf32, #tpu.memory_space<vmem>>, vector<1x256xf32>,
    return
  }
  func.func @transform_0(%arg0: i32) -> (i32, i32) {
    %c0_i32 = arith.constant 0 : i32
    %c0_i32_0 = arith.constant 0 : i32
    return %c0_i32, %arg0 : i32, i32
  }
  func.func @transform_1(%arg0: i32) -> (i32, i32) {
    %c0_i32 = arith.constant 0 : i32
    %c0_i32_0 = arith.constant 0 : i32
    %c0_i32_1 = arith.constant 0 : i32
    return %c0_i32, %c0_i32_0 : i32, i32
  }
  func.func @transform_2(%arg0: i32) -> (i32, i32) {
    %c0_i32 = arith.constant 0 : i32
    %c0_i32_0 = arith.constant 0 : i32
    %c0_i32_1 = arith.constant 0 : i32
    return %c0_i32, %c0_i32_0 : i32, i32
  }
  func.func @transform_3(%arg0: i32) -> (i32, i32) {
    %c0_i32 = arith.constant 0 : i32
    %c0_i32_0 = arith.constant 0 : i32
    %c0_i32_1 = arith.constant 0 : i32
    return %c0_i32, %c0_i32_0 : i32, i32
  }
  func.func @transform_4(%arg0: i32) -> (i32, i32) {
    %c0_i32 = arith.constant 0 : i32
    %c0_i32_0 = arith.constant 0 : i32
    %c0_i32_1 = arith.constant 0 : i32
    return %c0_i32, %c0_i32_0 : i32, i32
  }
  func.func @transform_5(%arg0: i32) -> (i32, i32) {
    %c0_i32 = arith.constant 0 : i32
    %c0_i32_0 = arith.constant 0 : i32
    %c0_i32_1 = arith.constant 0 : i32
    return %c0_i32, %c0_i32_0 : i32, i32
  }
  func.func @transform_6(%arg0: i32) -> (i32, i32) {
    %c0_i32 = arith.constant 0 : i32
    %c0_i32_0 = arith.constant 0 : i32
    %c0_i32_1 = arith.constant 0 : i32
    return %c0_i32, %c0_i32_0 : i32, i32
  }
  func.func @transform_7(%arg0: i32) -> (i32, i32) {
    %c0_i32 = arith.constant 0 : i32
    %c0_i32_0 = arith.constant 0 : i32
    %c0_i32_1 = arith.constant 0 : i32
    return %c0_i32, %c0_i32_0 : i32, i32
  }
  func.func @transform_8(%arg0: i32) -> (i32, i32) {
    %c0_i32 = arith.constant 0 : i32
    %c0_i32_0 = arith.constant 0 : i32
    %c0_i32_1 = arith.constant 0 : i32
    return %c0_i32, %c0_i32_0 : i32, i32
  }
  func.func @transform_9(%arg0: i32) -> (i32, i32) {
    %c0_i32 = arith.constant 0 : i32
    %c0_i32_0 = arith.constant 0 : i32
    %c0_i32_1 = arith.constant 0 : i32
    return %c0_i32, %c0_i32_0 : i32, i32
  }
  func.func @transform_10(%arg0: i32) -> (i32, i32) {
    %c0_i32 = arith.constant 0 : i32
    %c0_i32_0 = arith.constant 0 : i32
    %c0_i32_1 = arith.constant 0 : i32
    return %c0_i32, %c0_i32_0 : i32, i32
  }
  func.func @transform_11(%arg0: i32) -> (i32, i32) {
    %c0_i32 = arith.constant 0 : i32
    %c0_i32_0 = arith.constant 0 : i32
    return %c0_i32, %arg0 : i32, i32
  }
}

</mosaic_0001>

<llo_original>
// kernel: homo_forward.1
$region0: #{homo_forward.1}
  #allocation0 [shape = 'u32[]', space=smem, size = 0x4, offset = 0x4, fixed_abs, tag = 'smem constant byte address 0x4 - core index']
  #allocation1 [shape = 'u32[144,128]{1,0:T(1,128)}', space=vmem, size = 0x12000, scoped, tag = 'internal scratch']
  #allocation2 [shape = 'f32[1,1]{1,0:T(1,128)S(1)}', space=vmem, size = 0x200, scoped, tag = 'scoped memory for homo_forward.1']
  %s0 = inlined_call_operand.vmem [shape: f32[2,512], index: 0, kind: input, shape index: {}]
  %s1 = inlined_call_operand.vmem [shape: f32[32,2], index: 1, kind: input, shape index: {}]
  %s2 = inlined_call_operand.vmem [shape: f32[32,1], index: 2, kind: input, shape index: {}]
  %s3 = inlined_call_operand.vmem [shape: f32[32,32], index: 3, kind: input, shape index: {}]
  %s4 = inlined_call_operand.vmem [shape: f32[32,1], index: 4, kind: input, shape index: {}]
  %s5 = inlined_call_operand.vmem [shape: f32[32,32], index: 5, kind: input, shape index: {}]
  %s6 = inlined_call_operand.vmem [shape: f32[32,1], index: 6, kind: input, shape index: {}]
  %s7 = inlined_call_operand.vmem [shape: f32[32,32], index: 7, kind: input, shape index: {}]
  %s8 = inlined_call_operand.vmem [shape: f32[32,1], index: 8, kind: input, shape index: {}]
  %s9 = inlined_call_operand.vmem [shape: f32[32,1], index: 9, kind: input, shape index: {}]
  %s10 = inlined_call_operand.<no memory space> [shape: f32[1,1], index: 10, kind: input, shape index: {}]
  %s11 = inlined_call_operand.vmem [shape: f32[1,512], index: 11, kind: output, shape index: {}]
  %s12 = sld [smem:[#allocation0]]
  $region77: #{homo_forward.1} parent=0
    _
  %s14 = ssub.s32 1, %s12
  %s15 = scalar_select 0, %s14, %s12
  %v16 = vstv %s10
  %17 = vst [vmem:[#allocation2] sm:$0x1] %v16
  loop: start=0, step=1, limit=4
  $region2: #{homo_forward.1} parent=0 // loop_pre_header
    _
  $region3: #{homo_forward.1} parent=0 // loop_header
    %s19 = sphi 0, %s23
    %p20 = scmp.ge.s32.totalorder %s19, 4
    %s29 = sphi 0, %s31
    %s32 = sphi 0, %s29
    %s33 = sphi 0, %s32
    %s49 = sphi 0, %s33
    %s53 = sphi 0, %s53
    %s55 = sphi 0, %s53
    %s56 = sphi 0, %s55
    %s70 = sphi 0, %s56
    %s74 = sphi 0, %s74
    %s76 = sphi 0, %s74
    %s77 = sphi 0, %s76
    %s91 = sphi 0, %s77
    %s95 = sphi 0, %s95
    %s97 = sphi 0, %s95
    %s98 = sphi 0, %s97
    %s112 = sphi 0, %s98
    %s116 = sphi 0, %s116
    %s118 = sphi 0, %s116
    %s119 = sphi 0, %s118
    %s133 = sphi 0, %s119
    %s137 = sphi 0, %s137
    %s139 = sphi 0, %s137
    %s140 = sphi 0, %s139
    %s154 = sphi 0, %s140
    %s158 = sphi 0, %s158
    %s160 = sphi 0, %s158
    %s161 = sphi 0, %s160
    %s175 = sphi 0, %s161
    %s179 = sphi 0, %s179
    %s181 = sphi 0, %s179
    %s182 = sphi 0, %s181
    %s196 = sphi 0, %s182
    %s200 = sphi 0, %s200
    %s202 = sphi 0, %s200
    %s203 = sphi 0, %s202
    %s217 = sphi 0, %s203
    %s221 = sphi 0, %s221
    %s223 = sphi 0, %s221
    %s224 = sphi 0, %s223
    %s238 = sphi 0, %s224
    %s242 = sphi 0, %s242
    %s244 = sphi 0, %s242
    %s245 = sphi 0, %s244
    %s259 = sphi 0, %s245
    %s265 = sphi 0, %s267
    %s268 = sphi 0, %s265
    %s269 = sphi 0, %s268
    %s285 = sphi 0, %s269
  $region4: #{homo_forward.1} parent=0 // loop_header_branch
    %22 = sbr.rel (%p20) target = $region8
  $region5: #{homo_forward.1} parent=0 // loop_body
    %s24 = ssub.s32 %s19, 1
    %s25 = ssub.s32 %s19, 2
    %s26 = sadd.s32 %s19, 1
    %s27 = ssub.s32 %s19, %s26
    %p28 = scmp.eq.s32.totalorder %s27, 0
    %s30 = sadd.s32 %s29, 1
    %s31 = scalar_select %p28, %s29, %s30
    %p34 = pneg %p28
    %p35 = scmp.eq.s32.totalorder %s19, 1
    %p36 = por %p34, %p35
    %p37 = scmp.ne.s32.totalorder %s29, %s32
    %p38 = scmp.eq.s32.totalorder %s19, 0
    %p39 = por %p37, %p38
    %p40 = scmp.ne.s32.totalorder %s29, %s32
    %p41 = scmp.eq.s32.totalorder %s24, 1
    %p42 = por %p40, %p41
    %p43 = scmp.ne.s32.totalorder %s32, %s33
    %p44 = scmp.eq.s32.totalorder %s24, 0
    %p45 = por %p43, %p44
    %p46 = scmp.ne.s32.totalorder %s32, %s33
    %p47 = scmp.eq.s32.totalorder %s25, 1
    %p48 = por %p46, %p47
    %p50 = scmp.ne.s32.totalorder %s33, %s49
    %p51 = scmp.eq.s32.totalorder %s25, 0
    %p52 = por %p50, %p51
    %s54 = sadd.s32 %s53, 1
    %p57 = scmp.eq.s32.totalorder %s19, 1
    %p58 = scmp.ne.s32.totalorder %s53, %s55
    %p59 = scmp.eq.s32.totalorder %s19, 0
    %p60 = por %p58, %p59
    %p61 = scmp.ne.s32.totalorder %s53, %s55
    %p62 = scmp.eq.s32.totalorder %s24, 1
    %p63 = por %p61, %p62
    %p64 = scmp.ne.s32.totalorder %s55, %s56
    %p65 = scmp.eq.s32.totalorder %s24, 0
    %p66 = por %p64, %p65
    %p67 = scmp.ne.s32.totalorder %s55, %s56
    %p68 = scmp.eq.s32.totalorder %s25, 1
    %p69 = por %p67, %p68
    %p71 = scmp.ne.s32.totalorder %s56, %s70
    %p72 = scmp.eq.s32.totalorder %s25, 0
    %p73 = por %p71, %p72
    %s75 = sadd.s32 %s74, 1
    %p78 = scmp.eq.s32.totalorder %s19, 1
    %p79 = scmp.ne.s32.totalorder %s74, %s76
    %p80 = scmp.eq.s32.totalorder %s19, 0
    %p81 = por %p79, %p80
    %p82 = scmp.ne.s32.totalorder %s74, %s76
    %p83 = scmp.eq.s32.totalorder %s24, 1
    %p84 = por %p82, %p83
    %p85 = scmp.ne.s32.totalorder %s76, %s77
    %p86 = scmp.eq.s32.totalorder %s24, 0
    %p87 = por %p85, %p86
    %p88 = scmp.ne.s32.totalorder %s76, %s77
    %p89 = scmp.eq.s32.totalorder %s25, 1
    %p90 = por %p88, %p89
    %p92 = scmp.ne.s32.totalorder %s77, %s91
    %p93 = scmp.eq.s32.totalorder %s25, 0
    %p94 = por %p92, %p93
    %s96 = sadd.s32 %s95, 1
    %p99 = scmp.eq.s32.totalorder %s19, 1
    %p100 = scmp.ne.s32.totalorder %s95, %s97
    %p101 = scmp.eq.s32.totalorder %s19, 0
    %p102 = por %p100, %p101
    %p103 = scmp.ne.s32.totalorder %s95, %s97
    %p104 = scmp.eq.s32.totalorder %s24, 1
    %p105 = por %p103, %p104
    %p106 = scmp.ne.s32.totalorder %s97, %s98
    %p107 = scmp.eq.s32.totalorder %s24, 0
    %p108 = por %p106, %p107
    %p109 = scmp.ne.s32.totalorder %s97, %s98
    %p110 = scmp.eq.s32.totalorder %s25, 1
    %p111 = por %p109, %p110
    %p113 = scmp.ne.s32.totalorder %s98, %s112
    %p114 = scmp.eq.s32.totalorder %s25, 0
    %p115 = por %p113, %p114
    %s117 = sadd.s32 %s116, 1
    %p120 = scmp.eq.s32.totalorder %s19, 1
    %p121 = scmp.ne.s32.totalorder %s116, %s118
    %p122 = scmp.eq.s32.totalorder %s19, 0
    %p123 = por %p121, %p122
    %p124 = scmp.ne.s32.totalorder %s116, %s118
    %p125 = scmp.eq.s32.totalorder %s24, 1
    %p126 = por %p124, %p125
    %p127 = scmp.ne.s32.totalorder %s118, %s119
    %p128 = scmp.eq.s32.totalorder %s24, 0
    %p129 = por %p127, %p128
    %p130 = scmp.ne.s32.totalorder %s118, %s119
    %p131 = scmp.eq.s32.totalorder %s25, 1
    %p132 = por %p130, %p131
    %p134 = scmp.ne.s32.totalorder %s119, %s133
    %p135 = scmp.eq.s32.totalorder %s25, 0
    %p136 = por %p134, %p135
    %s138 = sadd.s32 %s137, 1
    %p141 = scmp.eq.s32.totalorder %s19, 1
    %p142 = scmp.ne.s32.totalorder %s137, %s139
    %p143 = scmp.eq.s32.totalorder %s19, 0
    %p144 = por %p142, %p143
    %p145 = scmp.ne.s32.totalorder %s137, %s139
    %p146 = scmp.eq.s32.totalorder %s24, 1
    %p147 = por %p145, %p146
    %p148 = scmp.ne.s32.totalorder %s139, %s140
    %p149 = scmp.eq.s32.totalorder %s24, 0
    %p150 = por %p148, %p149
    %p151 = scmp.ne.s32.totalorder %s139, %s140
    %p152 = scmp.eq.s32.totalorder %s25, 1
    %p153 = por %p151, %p152
    %p155 = scmp.ne.s32.totalorder %s140, %s154
    %p156 = scmp.eq.s32.totalorder %s25, 0
    %p157 = por %p155, %p156
    %s159 = sadd.s32 %s158, 1
    %p162 = scmp.eq.s32.totalorder %s19, 1
    %p163 = scmp.ne.s32.totalorder %s158, %s160
    %p164 = scmp.eq.s32.totalorder %s19, 0
    %p165 = por %p163, %p164
    %p166 = scmp.ne.s32.totalorder %s158, %s160
    %p167 = scmp.eq.s32.totalorder %s24, 1
    %p168 = por %p166, %p167
    %p169 = scmp.ne.s32.totalorder %s160, %s161
    %p170 = scmp.eq.s32.totalorder %s24, 0
    %p171 = por %p169, %p170
    %p172 = scmp.ne.s32.totalorder %s160, %s161
    %p173 = scmp.eq.s32.totalorder %s25, 1
    %p174 = por %p172, %p173
    %p176 = scmp.ne.s32.totalorder %s161, %s175
    %p177 = scmp.eq.s32.totalorder %s25, 0
    %p178 = por %p176, %p177
    %s180 = sadd.s32 %s179, 1
    %p183 = scmp.eq.s32.totalorder %s19, 1
    %p184 = scmp.ne.s32.totalorder %s179, %s181
    %p185 = scmp.eq.s32.totalorder %s19, 0
    %p186 = por %p184, %p185
    %p187 = scmp.ne.s32.totalorder %s179, %s181
    %p188 = scmp.eq.s32.totalorder %s24, 1
    %p189 = por %p187, %p188
    %p190 = scmp.ne.s32.totalorder %s181, %s182
    %p191 = scmp.eq.s32.totalorder %s24, 0
    %p192 = por %p190, %p191
    %p193 = scmp.ne.s32.totalorder %s181, %s182
    %p194 = scmp.eq.s32.totalorder %s25, 1
    %p195 = por %p193, %p194
    %p197 = scmp.ne.s32.totalorder %s182, %s196
    %p198 = scmp.eq.s32.totalorder %s25, 0
    %p199 = por %p197, %p198
    %s201 = sadd.s32 %s200, 1
    %p204 = scmp.eq.s32.totalorder %s19, 1
    %p205 = scmp.ne.s32.totalorder %s200, %s202
    %p206 = scmp.eq.s32.totalorder %s19, 0
    %p207 = por %p205, %p206
    %p208 = scmp.ne.s32.totalorder %s200, %s202
    %p209 = scmp.eq.s32.totalorder %s24, 1
    %p210 = por %p208, %p209
    %p211 = scmp.ne.s32.totalorder %s202, %s203
    %p212 = scmp.eq.s32.totalorder %s24, 0
    %p213 = por %p211, %p212
    %p214 = scmp.ne.s32.totalorder %s202, %s203
    %p215 = scmp.eq.s32.totalorder %s25, 1
    %p216 = por %p214, %p215
    %p218 = scmp.ne.s32.totalorder %s203, %s217
    %p219 = scmp.eq.s32.totalorder %s25, 0
    %p220 = por %p218, %p219
    %s222 = sadd.s32 %s221, 1
    %p225 = scmp.eq.s32.totalorder %s19, 1
    %p226 = scmp.ne.s32.totalorder %s221, %s223
    %p227 = scmp.eq.s32.totalorder %s19, 0
    %p228 = por %p226, %p227
    %p229 = scmp.ne.s32.totalorder %s221, %s223
    %p230 = scmp.eq.s32.totalorder %s24, 1
    %p231 = por %p229, %p230
    %p232 = scmp.ne.s32.totalorder %s223, %s224
    %p233 = scmp.eq.s32.totalorder %s24, 0
    %p234 = por %p232, %p233
    %p235 = scmp.ne.s32.totalorder %s223, %s224
    %p236 = scmp.eq.s32.totalorder %s25, 1
    %p237 = por %p235, %p236
    %p239 = scmp.ne.s32.totalorder %s224, %s238
    %p240 = scmp.eq.s32.totalorder %s25, 0
    %p241 = por %p239, %p240
    %s243 = sadd.s32 %s242, 1
    %p246 = scmp.eq.s32.totalorder %s19, 1
    %p247 = scmp.ne.s32.totalorder %s242, %s244
    %p248 = scmp.eq.s32.totalorder %s19, 0
    %p249 = por %p247, %p248
    %p250 = scmp.ne.s32.totalorder %s242, %s244
    %p251 = scmp.eq.s32.totalorder %s24, 1
    %p252 = por %p250, %p251
    %p253 = scmp.ne.s32.totalorder %s244, %s245
    %p254 = scmp.eq.s32.totalorder %s24, 0
    %p255 = por %p253, %p254
    %p256 = scmp.ne.s32.totalorder %s244, %s245
    %p257 = scmp.eq.s32.totalorder %s25, 1
    %p258 = por %p256, %p257
    %p260 = scmp.ne.s32.totalorder %s245, %s259
    %p261 = scmp.eq.s32.totalorder %s25, 0
    %p262 = por %p260, %p261
    %s263 = ssub.s32 %s19, %s26
    %p264 = scmp.eq.s32.totalorder %s263, 0
    %s266 = sadd.s32 %s265, 1
    %s267 = scalar_select %p264, %s265, %s266
    %p270 = pneg %p264
    %p271 = scmp.eq.s32.totalorder %s19, 1
    %p272 = por %p270, %p271
    %p273 = scmp.ne.s32.totalorder %s265, %s268
    %p274 = scmp.eq.s32.totalorder %s19, 0
    %p275 = por %p273, %p274
    %p276 = scmp.ne.s32.totalorder %s265, %s268
    %p277 = scmp.eq.s32.totalorder %s24, 1
    %p278 = por %p276, %p277
    %p279 = scmp.ne.s32.totalorder %s268, %s269
    %p280 = scmp.eq.s32.totalorder %s24, 0
    %p281 = por %p279, %p280
    %p282 = scmp.ne.s32.totalorder %s268, %s269
    %p283 = scmp.eq.s32.totalorder %s25, 1
    %p284 = por %p282, %p283
    %p286 = scmp.ne.s32.totalorder %s269, %s285
    %p287 = scmp.eq.s32.totalorder %s25, 0
    %p288 = por %p286, %p287
    %p289 = scmp.le.s32.totalorder 1, %s19
    %p290 = scmp.lt.s32.totalorder %s19, 3
    %p291 = pnand %p289, %p290
    %p292 = pneg %p291
    // Predicated region
    $region9: #{homo_forward.1} parent=5 // pred_check
      _
    $region10: #{homo_forward.1} parent=5 // pred_check_branch
      %294 = sbr.rel (%p291) target = $region12
    $region11: #{homo_forward.1} parent=5 // pred_region
      %s295 = ssub.s32 %s19, 1
      // Predicated region
      $region13: #{homo_forward.1} parent=11 // pred_check
        %p296 = pneg %p66
      $region14: #{homo_forward.1} parent=11 // pred_check_branch
        %298 = sbr.rel (%p296) target = $region16
      $region15: #{homo_forward.1} parent=11 // pred_region
        _
      $region16: #{homo_forward.1} parent=11 // pred_fallthru
        _
      // Predicated region
      $region17: #{homo_forward.1} parent=11 // pred_check
        %p299 = pneg %p87
      $region18: #{homo_forward.1} parent=11 // pred_check_branch
        %301 = sbr.rel (%p299) target = $region20
      $region19: #{homo_forward.1} parent=11 // pred_region
        _
      $region20: #{homo_forward.1} parent=11 // pred_fallthru
        _
      // Predicated region
      $region21: #{homo_forward.1} parent=11 // pred_check
        %p302 = pneg %p108
      $region22: #{homo_forward.1} parent=11 // pred_check_branch
        %304 = sbr.rel (%p302) target = $region24
      $region23: #{homo_forward.1} parent=11 // pred_region
        _
      $region24: #{homo_forward.1} parent=11 // pred_fallthru
        _
      // Predicated region
      $region25: #{homo_forward.1} parent=11 // pred_check
        %p305 = pneg %p129
      $region26: #{homo_forward.1} parent=11 // pred_check_branch
        %307 = sbr.rel (%p305) target = $region28
      $region27: #{homo_forward.1} parent=11 // pred_region
        _
      $region28: #{homo_forward.1} parent=11 // pred_fallthru
        _
      // Predicated region
      $region29: #{homo_forward.1} parent=11 // pred_check
        %p308 = pneg %p150
      $region30: #{homo_forward.1} parent=11 // pred_check_branch
        %310 = sbr.rel (%p308) target = $region32
      $region31: #{homo_forward.1} parent=11 // pred_region
        _
      $region32: #{homo_forward.1} parent=11 // pred_fallthru
        _
      // Predicated region
      $region33: #{homo_forward.1} parent=11 // pred_check
        %p311 = pneg %p171
      $region34: #{homo_forward.1} parent=11 // pred_check_branch
        %313 = sbr.rel (%p311) target = $region36
      $region35: #{homo_forward.1} parent=11 // pred_region
        _
      $region36: #{homo_forward.1} parent=11 // pred_fallthru
        _
      // Predicated region
      $region37: #{homo_forward.1} parent=11 // pred_check
        %p314 = pneg %p192
      $region38: #{homo_forward.1} parent=11 // pred_check_branch
        %316 = sbr.rel (%p314) target = $region40
      $region39: #{homo_forward.1} parent=11 // pred_region
        _
      $region40: #{homo_forward.1} parent=11 // pred_fallthru
        _
      // Predicated region
      $region41: #{homo_forward.1} parent=11 // pred_check
        %p317 = pneg %p213
      $region42: #{homo_forward.1} parent=11 // pred_check_branch
        %319 = sbr.rel (%p317) target = $region44
      $region43: #{homo_forward.1} parent=11 // pred_region
        _
      $region44: #{homo_forward.1} parent=11 // pred_fallthru
        _
      // Predicated region
      $region45: #{homo_forward.1} parent=11 // pred_check
        %p320 = pneg %p234
      $region46: #{homo_forward.1} parent=11 // pred_check_branch
        %322 = sbr.rel (%p320) target = $region48
      $region47: #{homo_forward.1} parent=11 // pred_region
        _
      $region48: #{homo_forward.1} parent=11 // pred_fallthru
        _
      // Predicated region
      $region49: #{homo_forward.1} parent=11 // pred_check
        %p323 = pneg %p255
      $region50: #{homo_forward.1} parent=11 // pred_check_branch
        %325 = sbr.rel (%p323) target = $region52
      $region51: #{homo_forward.1} parent=11 // pred_region
        _
      $region52: #{homo_forward.1} parent=11 // pred_fallthru
        _
    $region12: #{homo_forward.1} parent=5 // pred_fallthru
      _
    %p326 = scmp.lt.s32.totalorder %s19, 2
    // Predicated region
    $region53: #{homo_forward.1} parent=5 // pred_check
      %p327 = pneg %p326
    $region54: #{homo_forward.1} parent=5 // pred_check_branch
      %329 = sbr.rel (%p327) target = $region56
    $region55: #{homo_forward.1} parent=5 // pred_region
      // Predicated region
      $region57: #{homo_forward.1} parent=55 // pred_check
        %p330 = pneg %p39
      $region58: #{homo_forward.1} parent=55 // pred_check_branch
        %332 = sbr.rel (%p330) target = $region60
      $region59: #{homo_forward.1} parent=55 // pred_region
        %s333 = smul.u32 2, %s19
        %p334 = scmp.lt.s32.totalorder %s333, 3
        %s335 = scalar_select %p334, %s333, 3
        %s336 = smul.addr %s335, 2
        %s337 = scalar_lea.vmem %s0, %s336
        %s338 = smul.u32 2, %s19
      $region60: #{homo_forward.1} parent=55 // pred_fallthru
        _
    $region56: #{homo_forward.1} parent=5 // pred_fallthru
      _
    %p339 = scmp.le.s32.totalorder 1, %s19
    %p340 = scmp.lt.s32.totalorder %s19, 3
    %p341 = pnand %p339, %p340
    %p342 = pneg %p341
    // Predicated region
    $region61: #{homo_forward.1} parent=5 // pred_check
      _
    $region62: #{homo_forward.1} parent=5 // pred_check_branch
      %344 = sbr.rel (%p341) target = $region64
    $region63: #{homo_forward.1} parent=5 // pred_region
      %s345 = ssub.s32 %s19, 1
      %s346 = smul.u32 2, %s24
      %p347 = scmp.lt.s32.totalorder %s346, 3
      %s348 = scalar_select %p347, %s346, 3
      %s349 = smul.addr %s348, 2
      %s350 = scalar_lea.vmem %s0, %s349
      %p351 = pneg %p45
      %p352 = pneg %p42
      %p353 = pneg %p66
      %p354 = pneg %p63
      %p355 = pneg %p87
      %p356 = pneg %p84
      %p357 = pneg %p108
      %p358 = pneg %p105
      %p359 = pneg %p129
      %p360 = pneg %p126
      %p361 = pneg %p150
      %p362 = pneg %p147
      %p363 = pneg %p171
      %p364 = pneg %p168
      %p365 = pneg %p192
      %p366 = pneg %p189
      %p367 = pneg %p213
      %p368 = pneg %p210
      %p369 = pneg %p234
      %p370 = pneg %p231
      %p371 = pneg %p255
      %p372 = pneg %p252
      %p373 = pneg %p281
      %p374 = pneg %p278
      %s375 = smul.u32 2, %s24
      %p376 = scmp.lt.s32.totalorder %s375, 3
      %s377 = scalar_select %p376, %s375, 3
      %s378 = scalar_lea.vmem %s11, %s377
      %s379 = smul.u32 2, %s24
      %p380 = scmp.lt.s32.totalorder %s379, 3
      %s381 = scalar_select %p380, %s379, 3
      %s382 = smul.addr %s381, 2
      %s383 = scalar_lea.vmem %s0, %s382
      %s384 = smul.u32 2, %s24
      %s385 = smul.u32 2, %s24
      %p386 = scmp.lt.s32.totalorder %s385, 3
      %s387 = scalar_select %p386, %s385, 3
      %s388 = scalar_lea.vmem %s11, %s387
      %s389 = smul.u32 2, %s24
      %v390 = vld [vmem:[%s1] sm:$0xff]
      %v391 = vld [vmem:[%s1 + $0x8] sm:$0xff]
      %v392 = vld [vmem:[%s1 + $0x10] sm:$0xff]
      %v393 = vld [vmem:[%s1 + $0x18] sm:$0xff]
      %v394 = vld [vmem:[%s383] ss:$2 sm:$0x3]
      %396 = vset.pattern.permute.xlu0 0
      %397 = vperm.xlu0 %396, %v390
      %v398 = vpop.permute.xlu0 %397
      %401 = vset.pattern.permute.xlu0 0
      %402 = vperm.xlu0 %401, %v391
      %v403 = vpop.permute.xlu0 %402
      %406 = vset.pattern.permute.xlu0 0
      %407 = vperm.xlu0 %406, %v392
      %v408 = vpop.permute.xlu0 %407
      %411 = vset.pattern.permute.xlu0 0
      %412 = vperm.xlu0 %411, %v393
      %v413 = vpop.permute.xlu0 %412
      %v416 = vlaneseq
      %v417 = vshrl.u32 %v416, 7
      %v418 = vsub.s32 0, %v417
      %v419 = vrot.slane %v394, %v418
      %v420 = vlaneseq
      %v421 = vshrl.u32 %v420, 7
      %v422 = vsub.s32 1, %v421
      %v423 = vrot.slane %v394, %v422
      %v426 = vmul.f32 %v398, %v419
      %v427 = vmul.f32 %v398, %v423
      %v428 = vmul.f32 %v403, %v419
      %v429 = vmul.f32 %v403, %v423
      %v430 = vmul.f32 %v408, %v419
      %v431 = vmul.f32 %v408, %v423
      %v432 = vmul.f32 %v413, %v419
      %v433 = vmul.f32 %v413, %v423
      %s434 = scalar_lea.vmem %s383, 1
      %v435 = vld [vmem:[%s434] ss:$2 sm:$0x3]
      %436 = vset.pattern.permute.xlu0 1
      %437 = vperm.xlu0 %436, %v390
      %v438 = vpop.permute.xlu0 %437
      %440 = vset.pattern.permute.xlu0 1
      %441 = vperm.xlu0 %440, %v391
      %v442 = vpop.permute.xlu0 %441
      %444 = vset.pattern.permute.xlu0 1
      %445 = vperm.xlu0 %444, %v392
      %v446 = vpop.permute.xlu0 %445
      %448 = vset.pattern.permute.xlu0 1
      %449 = vperm.xlu0 %448, %v393
      %v450 = vpop.permute.xlu0 %449
      %v453 = vlaneseq
      %v454 = vshrl.u32 %v453, 7
      %v455 = vsub.s32 0, %v454
      %v456 = vrot.slane %v435, %v455
      %v457 = vlaneseq
      %v458 = vshrl.u32 %v457, 7
      %v459 = vsub.s32 1, %v458
      %v460 = vrot.slane %v435, %v459
      %v463 = vmul.f32 %v438, %v456
      %v464 = vmul.f32 %v438, %v460
      %v465 = vmul.f32 %v442, %v456
      %v466 = vmul.f32 %v442, %v460
      %v467 = vmul.f32 %v446, %v456
      %v468 = vmul.f32 %v446, %v460
      %v469 = vmul.f32 %v450, %v456
      %v470 = vmul.f32 %v450, %v460
      %v471 = vadd.f32 %v426, %v463
      %v472 = vadd.f32 %v427, %v464
      %v473 = vadd.f32 %v428, %v465
      %v474 = vadd.f32 %v429, %v466
      %v475 = vadd.f32 %v430, %v467
      %v476 = vadd.f32 %v431, %v468
      %v477 = vadd.f32 %v432, %v469
      %v478 = vadd.f32 %v433, %v470
      %v479 = vld [vmem:[%s2] sm:$0xff]
      %v480 = vld [vmem:[%s2 + $0x8] sm:$0xff]
      %v481 = vld [vmem:[%s2 + $0x10] sm:$0xff]
      %v482 = vld [vmem:[%s2 + $0x18] sm:$0xff]
      %484 = vset.pattern.permute.xlu0 0
      %485 = vperm.xlu0 %484, %v479
      %v486 = vpop.permute.xlu0 %485
      %489 = vset.pattern.permute.xlu0 0
      %490 = vperm.xlu0 %489, %v480
      %v491 = vpop.permute.xlu0 %490
      %494 = vset.pattern.permute.xlu0 0
      %495 = vperm.xlu0 %494, %v481
      %v496 = vpop.permute.xlu0 %495
      %499 = vset.pattern.permute.xlu0 0
      %500 = vperm.xlu0 %499, %v482
      %v501 = vpop.permute.xlu0 %500
      %v503 = vadd.f32 %v471, %v486
      %v504 = vadd.f32 %v472, %v486
      %v505 = vadd.f32 %v473, %v491
      %v506 = vadd.f32 %v474, %v491
      %v507 = vadd.f32 %v475, %v496
      %v508 = vadd.f32 %v476, %v496
      %v509 = vadd.f32 %v477, %v501
      %v510 = vadd.f32 %v478, %v501
      %v511 = vtanh.pop %v503
      %v512 = vtanh.pop %v504
      %v513 = vtanh.pop %v505
      %v514 = vtanh.pop %v506
      %v515 = vtanh.pop %v507
      %v516 = vtanh.pop %v508
      %v517 = vtanh.pop %v509
      %v518 = vtanh.pop %v510
      %v519 = vld [vmem:[%s3] sm:$0xff]
      %v520 = vld [vmem:[%s3 + $0x8] sm:$0xff]
      %v521 = vld [vmem:[%s3 + $0x10] sm:$0xff]
      %v522 = vld [vmem:[%s3 + $0x18] sm:$0xff]
      %v523 = vld [vmem:[%s4] sm:$0xff]
      %v524 = vld [vmem:[%s4 + $0x8] sm:$0xff]
      %v525 = vld [vmem:[%s4 + $0x10] sm:$0xff]
      %v526 = vld [vmem:[%s4 + $0x18] sm:$0xff]
      %528 = vset.pattern.permute.xlu0 0
      %529 = vperm.xlu0 %528, %v523
      %v530 = vpop.permute.xlu0 %529
      %533 = vset.pattern.permute.xlu0 0
      %534 = vperm.xlu0 %533, %v524
      %v535 = vpop.permute.xlu0 %534
      %538 = vset.pattern.permute.xlu0 0
      %539 = vperm.xlu0 %538, %v525
      %v540 = vpop.permute.xlu0 %539
      %543 = vset.pattern.permute.xlu0 0
      %544 = vperm.xlu0 %543, %v526
      %v545 = vpop.permute.xlu0 %544
      %vm547 = vcmask 261120
      %v549 = vsel %vm547, %v519, 0
      %v552 = vsel %vm547, %v520, 0
      %v555 = vsel %vm547, %v521, 0
      %v558 = vsel %vm547, %v522, 0
      %560 = vmatprep.subr.mxu0 %v512
      %561 = vmatpush1.msra.mxu0 %v511
      %562 = vmatprep.subr.mxu0 %v514
      %563 = vmatpush1.msra.mxu0 %v513
      %564 = vmatprep.subr.mxu0 %v516
      %565 = vmatpush1.msra.mxu0 %v515
      %566 = vmatprep.subr.mxu0 %v518
      %567 = vmatpush1.msra.mxu0 %v517
      %568 = vmatprep.subr.mxu0 0.0
      %569 = vmatpush1.msra.mxu0 0.0
      %570 = vmatprep.subr.mxu0 0.0
      %571 = vmatpush1.msra.mxu0 0.0
      %572 = vmatprep.subr.mxu0 0.0
      %573 = vmatpush1.msra.mxu0 0.0
      %574 = vmatprep.subr.mxu0 0.0
      %575 = vmatpush1.msra.mxu0 0.0
      %576 = vmatprep.subr.mxu0 0.0
      %577 = vmatpush1.msra.mxu0 0.0
      %578 = vmatprep.subr.mxu0 0.0
      %579 = vmatpush1.msra.mxu0 0.0
      %580 = vmatprep.subr.mxu0 0.0
      %581 = vmatpush1.msra.mxu0 0.0
      %582 = vmatprep.subr.mxu0 0.0
      %583 = vmatpush1.msra.mxu0 0.0
      %584 = vmatprep.subr.mxu0 0.0
      %585 = vmatpush1.msra.mxu0 0.0
      %586 = vmatprep.subr.mxu0 0.0
      %587 = vmatpush1.msra.mxu0 0.0
      %588 = vmatprep.subr.mxu0 0.0
      %589 = vmatpush1.msra.mxu0 0.0
      %590 = vmatprep.subr.mxu0 0.0
      %591 = vmatpush1.msra.mxu0 0.0
      %592 = vmatprep.subr.mxu0 0.0
      %593 = vmatpush1.msra.mxu0 0.0
      %594 = vmatprep.subr.mxu0 0.0
      %595 = vmatpush1.msra.mxu0 0.0
      %596 = vmatprep.subr.mxu0 0.0
      %597 = vmatpush1.msra.mxu0 0.0
      %598 = vmatprep.subr.mxu0 0.0
      %599 = vmatpush1.msra.mxu0 0.0
      %600 = vmatprep.subr.mxu0 0.0
      %601 = vmatpush1.msra.mxu0 0.0
      %602 = vmatprep.subr.mxu0 0.0
      %603 = vmatpush1.msra.mxu0 0.0
      %604 = vmatprep.subr.mxu0 0.0
      %605 = vmatpush1.msra.mxu0 0.0
      %606 = vmatprep.subr.mxu0 0.0
      %607 = vmatpush1.msra.mxu0 0.0
      %608 = vmatprep.subr.mxu0 0.0
      %609 = vmatpush1.msra.mxu0 0.0
      %610 = vmatprep.subr.mxu0 0.0
      %611 = vmatpush1.msra.mxu0 0.0
      %612 = vmatprep.subr.mxu0 0.0
      %613 = vmatpush1.msra.mxu0 0.0
      %614 = vmatprep.subr.mxu0 0.0
      %615 = vmatpush1.msra.mxu0 0.0
      %616 = vmatprep.subr.mxu0 0.0
      %617 = vmatpush1.msra.mxu0 0.0
      %618 = vmatprep.subr.mxu0 0.0
      %619 = vmatpush1.msra.mxu0 0.0
      %620 = vmatprep.subr.mxu0 0.0
      %621 = vmatpush1.msra.mxu0 0.0
      %622 = vmatprep.subr.mxu0 0.0
      %623 = vmatpush1.msra.mxu0 0.0
      %624 = vmatprep.mubr.f32.mxu0 0.0
      %625 = vmatmul.mubr.f32.gmra.mrb[0].mxu0 %v549
      %v626 = vpop.f32.mrb[0].mxu0
      %v627 = vadd.f32 %v530, %v626
      %v628 = vpop.f32.mrb[0].mxu0
      %v629 = vadd.f32 %v530, %v628
      %630 = vmatprep.mubr.f32.mxu0 0.0
      %631 = vmatmul.mubr.f32.gmra.mrb[0].mxu0 %v552
      %v632 = vpop.f32.mrb[0].mxu0
      %v633 = vadd.f32 %v535, %v632
      %v634 = vpop.f32.mrb[0].mxu0
      %v635 = vadd.f32 %v535, %v634
      %636 = vmatprep.mubr.f32.mxu0 0.0
      %637 = vmatmul.mubr.f32.gmra.mrb[0].mxu0 %v555
      %v638 = vpop.f32.mrb[0].mxu0
      %v639 = vadd.f32 %v540, %v638
      %v640 = vpop.f32.mrb[0].mxu0
      %v641 = vadd.f32 %v540, %v640
      %642 = vmatprep.mubr.f32.mxu0 0.0
      %643 = vmatmul.mubr.f32.gmra.mrb[0].mxu0 %v558
      %v644 = vpop.f32.mrb[0].mxu0
      %v645 = vadd.f32 %v545, %v644
      %v646 = vpop.f32.mrb[0].mxu0
      %v647 = vadd.f32 %v545, %v646
      %648 = vdwg.mxu0
      %v649 = vtanh.pop %v627
      %v650 = vtanh.pop %v629
      %v651 = vtanh.pop %v633
      %v652 = vtanh.pop %v635
      %v653 = vtanh.pop %v639
      %v654 = vtanh.pop %v641
      %v655 = vtanh.pop %v645
      %v656 = vtanh.pop %v647
      %v657 = vld [vmem:[%s5] sm:$0xff]
      %v658 = vld [vmem:[%s5 + $0x8] sm:$0xff]
      %v659 = vld [vmem:[%s5 + $0x10] sm:$0xff]
      %v660 = vld [vmem:[%s5 + $0x18] sm:$0xff]
      %v661 = vld [vmem:[%s6] sm:$0xff]
      %v662 = vld [vmem:[%s6 + $0x8] sm:$0xff]
      %v663 = vld [vmem:[%s6 + $0x10] sm:$0xff]
      %v664 = vld [vmem:[%s6 + $0x18] sm:$0xff]
      %666 = vset.pattern.permute.xlu0 0
      %667 = vperm.xlu0 %666, %v661
      %v668 = vpop.permute.xlu0 %667
      %671 = vset.pattern.permute.xlu0 0
      %672 = vperm.xlu0 %671, %v662
      %v673 = vpop.permute.xlu0 %672
      %676 = vset.pattern.permute.xlu0 0
      %677 = vperm.xlu0 %676, %v663
      %v678 = vpop.permute.xlu0 %677
      %681 = vset.pattern.permute.xlu0 0
      %682 = vperm.xlu0 %681, %v664
      %v683 = vpop.permute.xlu0 %682
      %v686 = vsel %vm547, %v657, 0
      %v689 = vsel %vm547, %v658, 0
      %v692 = vsel %vm547, %v659, 0
      %v695 = vsel %vm547, %v660, 0
      %697 = vmatprep.subr.mxu0 %v650
      %698 = vmatpush1.msra.mxu0 %v649
      %699 = vmatprep.subr.mxu0 %v652
      %700 = vmatpush1.msra.mxu0 %v651
      %701 = vmatprep.subr.mxu0 %v654
      %702 = vmatpush1.msra.mxu0 %v653
      %703 = vmatprep.subr.mxu0 %v656
      %704 = vmatpush1.msra.mxu0 %v655
      %705 = vmatprep.subr.mxu0 0.0
      %706 = vmatpush1.msra.mxu0 0.0
      %707 = vmatprep.subr.mxu0 0.0
      %708 = vmatpush1.msra.mxu0 0.0
      %709 = vmatprep.subr.mxu0 0.0
      %710 = vmatpush1.msra.mxu0 0.0
      %711 = vmatprep.subr.mxu0 0.0
      %712 = vmatpush1.msra.mxu0 0.0
      %713 = vmatprep.subr.mxu0 0.0
      %714 = vmatpush1.msra.mxu0 0.0
      %715 = vmatprep.subr.mxu0 0.0
      %716 = vmatpush1.msra.mxu0 0.0
      %717 = vmatprep.subr.mxu0 0.0
      %718 = vmatpush1.msra.mxu0 0.0
      %719 = vmatprep.subr.mxu0 0.0
      %720 = vmatpush1.msra.mxu0 0.0
      %721 = vmatprep.subr.mxu0 0.0
      %722 = vmatpush1.msra.mxu0 0.0
      %723 = vmatprep.subr.mxu0 0.0
      %724 = vmatpush1.msra.mxu0 0.0
      %725 = vmatprep.subr.mxu0 0.0
      %726 = vmatpush1.msra.mxu0 0.0
      %727 = vmatprep.subr.mxu0 0.0
      %728 = vmatpush1.msra.mxu0 0.0
      %729 = vmatprep.subr.mxu0 0.0
      %730 = vmatpush1.msra.mxu0 0.0
      %731 = vmatprep.subr.mxu0 0.0
      %732 = vmatpush1.msra.mxu0 0.0
      %733 = vmatprep.subr.mxu0 0.0
      %734 = vmatpush1.msra.mxu0 0.0
      %735 = vmatprep.subr.mxu0 0.0
      %736 = vmatpush1.msra.mxu0 0.0
      %737 = vmatprep.subr.mxu0 0.0
      %738 = vmatpush1.msra.mxu0 0.0
      %739 = vmatprep.subr.mxu0 0.0
      %740 = vmatpush1.msra.mxu0 0.0
      %741 = vmatprep.subr.mxu0 0.0
      %742 = vmatpush1.msra.mxu0 0.0
      %743 = vmatprep.subr.mxu0 0.0
      %744 = vmatpush1.msra.mxu0 0.0
      %745 = vmatprep.subr.mxu0 0.0
      %746 = vmatpush1.msra.mxu0 0.0
      %747 = vmatprep.subr.mxu0 0.0
      %748 = vmatpush1.msra.mxu0 0.0
      %749 = vmatprep.subr.mxu0 0.0
      %750 = vmatpush1.msra.mxu0 0.0
      %751 = vmatprep.subr.mxu0 0.0
      %752 = vmatpush1.msra.mxu0 0.0
      %753 = vmatprep.subr.mxu0 0.0
      %754 = vmatpush1.msra.mxu0 0.0
      %755 = vmatprep.subr.mxu0 0.0
      %756 = vmatpush1.msra.mxu0 0.0
      %757 = vmatprep.subr.mxu0 0.0
      %758 = vmatpush1.msra.mxu0 0.0
      %759 = vmatprep.subr.mxu0 0.0
      %760 = vmatpush1.msra.mxu0 0.0
      %761 = vmatprep.mubr.f32.mxu0 0.0
      %762 = vmatmul.mubr.f32.gmra.mrb[0].mxu0 %v686
      %v763 = vpop.f32.mrb[0].mxu0
      %v764 = vadd.f32 %v668, %v763
      %v765 = vpop.f32.mrb[0].mxu0
      %v766 = vadd.f32 %v668, %v765
      %767 = vmatprep.mubr.f32.mxu0 0.0
      %768 = vmatmul.mubr.f32.gmra.mrb[0].mxu0 %v689
      %v769 = vpop.f32.mrb[0].mxu0
      %v770 = vadd.f32 %v673, %v769
      %v771 = vpop.f32.mrb[0].mxu0
      %v772 = vadd.f32 %v673, %v771
      %773 = vmatprep.mubr.f32.mxu0 0.0
      %774 = vmatmul.mubr.f32.gmra.mrb[0].mxu0 %v692
      %v775 = vpop.f32.mrb[0].mxu0
      %v776 = vadd.f32 %v678, %v775
      %v777 = vpop.f32.mrb[0].mxu0
      %v778 = vadd.f32 %v678, %v777
      %779 = vmatprep.mubr.f32.mxu0 0.0
      %780 = vmatmul.mubr.f32.gmra.mrb[0].mxu0 %v695
      %v781 = vpop.f32.mrb[0].mxu0
      %v782 = vadd.f32 %v683, %v781
      %v783 = vpop.f32.mrb[0].mxu0
      %v784 = vadd.f32 %v683, %v783
      %785 = vdwg.mxu0
      %v786 = vtanh.pop %v764
      %v787 = vtanh.pop %v766
      %v788 = vtanh.pop %v770
      %v789 = vtanh.pop %v772
      %v790 = vtanh.pop %v776
      %v791 = vtanh.pop %v778
      %v792 = vtanh.pop %v782
      %v793 = vtanh.pop %v784
      %v794 = vadd.f32 %v786, %v511
      %v795 = vadd.f32 %v787, %v512
      %v796 = vadd.f32 %v788, %v513
      %v797 = vadd.f32 %v789, %v514
      %v798 = vadd.f32 %v790, %v515
      %v799 = vadd.f32 %v791, %v516
      %v800 = vadd.f32 %v792, %v517
      %v801 = vadd.f32 %v793, %v518
      %v802 = vld [vmem:[%s7] sm:$0xff]
      %v803 = vld [vmem:[%s7 + $0x8] sm:$0xff]
      %v804 = vld [vmem:[%s7 + $0x10] sm:$0xff]
      %v805 = vld [vmem:[%s7 + $0x18] sm:$0xff]
      %v806 = vld [vmem:[%s8] sm:$0xff]
      %v807 = vld [vmem:[%s8 + $0x8] sm:$0xff]
      %v808 = vld [vmem:[%s8 + $0x10] sm:$0xff]
      %v809 = vld [vmem:[%s8 + $0x18] sm:$0xff]
      %811 = vset.pattern.permute.xlu0 0
      %812 = vperm.xlu0 %811, %v806
      %v813 = vpop.permute.xlu0 %812
      %816 = vset.pattern.permute.xlu0 0
      %817 = vperm.xlu0 %816, %v807
      %v818 = vpop.permute.xlu0 %817
      %821 = vset.pattern.permute.xlu0 0
      %822 = vperm.xlu0 %821, %v808
      %v823 = vpop.permute.xlu0 %822
      %826 = vset.pattern.permute.xlu0 0
      %827 = vperm.xlu0 %826, %v809
      %v828 = vpop.permute.xlu0 %827
      %v831 = vsel %vm547, %v802, 0
      %v834 = vsel %vm547, %v803, 0
      %v837 = vsel %vm547, %v804, 0
      %v840 = vsel %vm547, %v805, 0
      %842 = vmatprep.subr.mxu0 %v795
      %843 = vmatpush1.msra.mxu0 %v794
      %844 = vmatprep.subr.mxu0 %v797
      %845 = vmatpush1.msra.mxu0 %v796
      %846 = vmatprep.subr.mxu0 %v799
      %847 = vmatpush1.msra.mxu0 %v798
      %848 = vmatprep.subr.mxu0 %v801
      %849 = vmatpush1.msra.mxu0 %v800
      %850 = vmatprep.subr.mxu0 0.0
      %851 = vmatpush1.msra.mxu0 0.0
      %852 = vmatprep.subr.mxu0 0.0
      %853 = vmatpush1.msra.mxu0 0.0
      %854 = vmatprep.subr.mxu0 0.0
      %855 = vmatpush1.msra.mxu0 0.0
      %856 = vmatprep.subr.mxu0 0.0
      %857 = vmatpush1.msra.mxu0 0.0
      %858 = vmatprep.subr.mxu0 0.0
      %859 = vmatpush1.msra.mxu0 0.0
      %860 = vmatprep.subr.mxu0 0.0
      %861 = vmatpush1.msra.mxu0 0.0
      %862 = vmatprep.subr.mxu0 0.0
      %863 = vmatpush1.msra.mxu0 0.0
      %864 = vmatprep.subr.mxu0 0.0
      %865 = vmatpush1.msra.mxu0 0.0
      %866 = vmatprep.subr.mxu0 0.0
      %867 = vmatpush1.msra.mxu0 0.0
      %868 = vmatprep.subr.mxu0 0.0
      %869 = vmatpush1.msra.mxu0 0.0
      %870 = vmatprep.subr.mxu0 0.0
      %871 = vmatpush1.msra.mxu0 0.0
      %872 = vmatprep.subr.mxu0 0.0
      %873 = vmatpush1.msra.mxu0 0.0
      %874 = vmatprep.subr.mxu0 0.0
      %875 = vmatpush1.msra.mxu0 0.0
      %876 = vmatprep.subr.mxu0 0.0
      %877 = vmatpush1.msra.mxu0 0.0
      %878 = vmatprep.subr.mxu0 0.0
      %879 = vmatpush1.msra.mxu0 0.0
      %880 = vmatprep.subr.mxu0 0.0
      %881 = vmatpush1.msra.mxu0 0.0
      %882 = vmatprep.subr.mxu0 0.0
      %883 = vmatpush1.msra.mxu0 0.0
      %884 = vmatprep.subr.mxu0 0.0
      %885 = vmatpush1.msra.mxu0 0.0
      %886 = vmatprep.subr.mxu0 0.0
      %887 = vmatpush1.msra.mxu0 0.0
      %888 = vmatprep.subr.mxu0 0.0
      %889 = vmatpush1.msra.mxu0 0.0
      %890 = vmatprep.subr.mxu0 0.0
      %891 = vmatpush1.msra.mxu0 0.0
      %892 = vmatprep.subr.mxu0 0.0
      %893 = vmatpush1.msra.mxu0 0.0
      %894 = vmatprep.subr.mxu0 0.0
      %895 = vmatpush1.msra.mxu0 0.0
      %896 = vmatprep.subr.mxu0 0.0
      %897 = vmatpush1.msra.mxu0 0.0
      %898 = vmatprep.subr.mxu0 0.0
      %899 = vmatpush1.msra.mxu0 0.0
      %900 = vmatprep.subr.mxu0 0.0
      %901 = vmatpush1.msra.mxu0 0.0
      %902 = vmatprep.subr.mxu0 0.0
      %903 = vmatpush1.msra.mxu0 0.0
      %904 = vmatprep.subr.mxu0 0.0
      %905 = vmatpush1.msra.mxu0 0.0
      %906 = vmatprep.mubr.f32.mxu0 0.0
      %907 = vmatmul.mubr.f32.gmra.mrb[0].mxu0 %v831
      %v908 = vpop.f32.mrb[0].mxu0
      %v909 = vadd.f32 %v813, %v908
      %v910 = vpop.f32.mrb[0].mxu0
      %v911 = vadd.f32 %v813, %v910
      %912 = vmatprep.mubr.f32.mxu0 0.0
      %913 = vmatmul.mubr.f32.gmra.mrb[0].mxu0 %v834
      %v914 = vpop.f32.mrb[0].mxu0
      %v915 = vadd.f32 %v818, %v914
      %v916 = vpop.f32.mrb[0].mxu0
      %v917 = vadd.f32 %v818, %v916
      %918 = vmatprep.mubr.f32.mxu0 0.0
      %919 = vmatmul.mubr.f32.gmra.mrb[0].mxu0 %v837
      %v920 = vpop.f32.mrb[0].mxu0
      %v921 = vadd.f32 %v823, %v920
      %v922 = vpop.f32.mrb[0].mxu0
      %v923 = vadd.f32 %v823, %v922
      %924 = vmatprep.mubr.f32.mxu0 0.0
      %925 = vmatmul.mubr.f32.gmra.mrb[0].mxu0 %v840
      %v926 = vpop.f32.mrb[0].mxu0
      %v927 = vadd.f32 %v828, %v926
      %v928 = vpop.f32.mrb[0].mxu0
      %v929 = vadd.f32 %v828, %v928
      %930 = vdwg.mxu0
      %v931 = vtanh.pop %v909
      %v932 = vtanh.pop %v911
      %v933 = vtanh.pop %v915
      %v934 = vtanh.pop %v917
      %v935 = vtanh.pop %v921
      %v936 = vtanh.pop %v923
      %v937 = vtanh.pop %v927
      %v938 = vtanh.pop %v929
      %v939 = vadd.f32 %v931, %v649
      %v940 = vadd.f32 %v932, %v650
      %v941 = vadd.f32 %v933, %v651
      %v942 = vadd.f32 %v934, %v652
      %v943 = vadd.f32 %v935, %v653
      %v944 = vadd.f32 %v936, %v654
      %v945 = vadd.f32 %v937, %v655
      %v946 = vadd.f32 %v938, %v656
      %v947 = vld [vmem:[%s9] sm:$0xff]
      %v948 = vld [vmem:[%s9 + $0x8] sm:$0xff]
      %v949 = vld [vmem:[%s9 + $0x10] sm:$0xff]
      %v950 = vld [vmem:[%s9 + $0x18] sm:$0xff]
      %v951 = vld [vmem:[#allocation2] sm:$0x1]
      %953 = vset.pattern.permute.xlu0 0
      %954 = vperm.xlu0 %953, %v947
      %v955 = vpop.permute.xlu0 %954
      %958 = vset.pattern.permute.xlu0 0
      %959 = vperm.xlu0 %958, %v948
      %v960 = vpop.permute.xlu0 %959
      %963 = vset.pattern.permute.xlu0 0
      %964 = vperm.xlu0 %963, %v949
      %v965 = vpop.permute.xlu0 %964
      %968 = vset.pattern.permute.xlu0 0
      %969 = vperm.xlu0 %968, %v950
      %v970 = vpop.permute.xlu0 %969
      %v972 = vmul.f32 %v955, %v939
      %v973 = vmul.f32 %v955, %v940
      %v974 = vmul.f32 %v960, %v941
      %v975 = vmul.f32 %v960, %v942
      %v976 = vmul.f32 %v965, %v943
      %v977 = vmul.f32 %v965, %v944
      %v978 = vmul.f32 %v970, %v945
      %v979 = vmul.f32 %v970, %v946
      %v980 = vadd.f32 %v972, %v974
      %v981 = vadd.f32 %v980, %v976
      %v982 = vadd.f32 %v981, %v978
      %v983 = vrot.slane %v982, 4
      %v984 = vadd.f32 %v982, %v983
      %v985 = vrot.slane %v984, 2
      %v986 = vadd.f32 %v984, %v985
      %v987 = vrot.slane %v986, 1
      %v988 = vadd.f32 %v986, %v987
      %v989 = vadd.f32 %v973, %v975
      %v990 = vadd.f32 %v989, %v977
      %v991 = vadd.f32 %v990, %v979
      %v992 = vrot.slane %v991, 4
      %v993 = vadd.f32 %v991, %v992
      %v994 = vrot.slane %v993, 2
      %v995 = vadd.f32 %v993, %v994
      %v996 = vrot.slane %v995, 1
      %v997 = vadd.f32 %v995, %v996
      %999 = vset.pattern.permute.xlu0 0
      %1000 = vperm.xlu0 %999, %v951
      %v1001 = vpop.permute.xlu0 %1000
      %v1003 = vlaneseq
      %v1004 = vshrl.u32 %v1003, 7
      %v1005 = vsub.s32 0, %v1004
      %v1006 = vrot.slane %v1001, %v1005
      %v1007 = vadd.f32 %v988, %v1006
      %v1008 = vadd.f32 %v997, %v1006
      %v1011 = vcombine.low %v1007, %v1008
      %v1013 = vunpack.c.l.s4 1966171168
      %v1014 = vunpack.c.0.s8 %v1013
      %v1015 = vlaneseq
      %v1016 = vshrl.u32 %v1015, 7
      %v1017 = vsub.s32 %v1014, %v1016
      %v1018 = vrot.slane %v1011, %v1017
      %v1020 = vunpack.c.l.s4 1966171168
      %v1021 = vunpack.c.0.s8 %v1020
      %v1022 = vlaneseq
      %v1023 = vshrl.u32 %v1022, 7
      %v1024 = vsub.s32 %v1021, %v1023
      %v1025 = vrot.slane %v1018, %v1024
      %v1027 = vlaneseq
      %vm1028 = vcmp.ge.s32.totalorder %v1027, 0
      %vm1029 = vcmp.lt.s32.totalorder %v1027, 256
      %vm1030 = vmand %vm1028, %vm1029
      %1031 = vst.msk [vmem:[%s388] sm:$0x3] %vm1030, %v1025
      %s1032 = smul.u32 2, %s24
      %p1033 = scmp.lt.s32.totalorder %s1032, 3
      %s1034 = scalar_select %p1033, %s1032, 3
      %s1035 = scalar_lea.vmem %s11, %s1034
      // Predicated region
      $region65: #{homo_forward.1} parent=63 // pred_check
        %p1036 = pneg %p278
      $region66: #{homo_forward.1} parent=63 // pred_check_branch
        %1038 = sbr.rel (%p1036) target = $region68
      $region67: #{homo_forward.1} parent=63 // pred_region
        %s1039 = smul.u32 2, %s24
      $region68: #{homo_forward.1} parent=63 // pred_fallthru
        _
    $region64: #{homo_forward.1} parent=5 // pred_fallthru
      _
    %p1040 = scmp.le.s32.totalorder 2, %s19
    // Predicated region
    $region69: #{homo_forward.1} parent=5 // pred_check
      %p1041 = pneg %p1040
    $region70: #{homo_forward.1} parent=5 // pred_check_branch
      %1043 = sbr.rel (%p1041) target = $region72
    $region71: #{homo_forward.1} parent=5 // pred_region
      %s1044 = ssub.s32 %s19, 2
      // Predicated region
      $region73: #{homo_forward.1} parent=71 // pred_check
        %p1045 = pneg %p284
      $region74: #{homo_forward.1} parent=71 // pred_check_branch
        %1047 = sbr.rel (%p1045) target = $region76
      $region75: #{homo_forward.1} parent=71 // pred_region
        %s1048 = smul.u32 2, %s25
        %p1049 = scmp.lt.s32.totalorder %s1048, 3
        %s1050 = scalar_select %p1049, %s1048, 3
        %s1051 = scalar_lea.vmem %s11, %s1050
      $region76: #{homo_forward.1} parent=71 // pred_fallthru
        _
    $region72: #{homo_forward.1} parent=5 // pred_fallthru
      _
  $region6: #{homo_forward.1} parent=0 // loop_footer
    %s23 = sadd.s32 1, %s19
  $region7: #{homo_forward.1} parent=0 // loop_footer_branch
    %18 = sbr.rel target = $region3
  $region8: #{homo_forward.1} parent=0 // loop_exit
    _

</llo_original>
